<compile_context>
chip_gen: v6e
topology: v6e:2x2x1
jax: 0.10.0
libtpu: 0.0.40
codegen_flags: <defaults>
</compile_context>

<pallas_src>
import jax
import jax.numpy as jnp
from jax import lax
from jax.experimental import pallas as pl
from jax.experimental.pallas import tpu as pltpu


# ---------------------------------------------------------------------------
# helpers
# ---------------------------------------------------------------------------
def _largest_divisor(n, cap):
    best = 1
    for d in range(1, min(n, cap) + 1):
        if n % d == 0:
            best = d
    return best


# ---------------------------------------------------------------------------
# 1) Embedding lookup: scalar-prefetched row gather.
# ---------------------------------------------------------------------------
def _embed_kernel(ids_ref, row_ref, out_ref):
    del ids_ref  # only used inside the index maps
    out_ref[...] = row_ref[...]


def embedding_lookup(ids_flat, emb_table):
    n = ids_flat.shape[0]
    v, e = emb_table.shape
    tab3 = emb_table.reshape(v, 1, e)
    out = pl.pallas_call(
        _embed_kernel,
        out_shape=jax.ShapeDtypeStruct((n, 1, e), jnp.float32),
        grid_spec=pltpu.PrefetchScalarGridSpec(
            num_scalar_prefetch=1,
            grid=(n,),
            in_specs=[pl.BlockSpec((1, 1, e), lambda i, ids: (ids[i], 0, 0))],
            out_specs=pl.BlockSpec((1, 1, e), lambda i, ids: (i, 0, 0)),
        ),
        compiler_params=pltpu.CompilerParams(
            dimension_semantics=("parallel",)),
    )(ids_flat.astype(jnp.int32), tab3)
    return out.reshape(n, e)


# ---------------------------------------------------------------------------
# 2) Per-layer input projection, hoisted out of the recurrence:
#       gi_dir = sum_j X_j @ W_dir_j + (b_ih + [b_hh_r, b_hh_z, 0])
#    One well-shaped MXU matmul per direction over all L*B rows.  Deeper
#    layers take the previous layer's fwd/bwd halves as separate inputs, so
#    the directions are never concatenated in HBM.
# ---------------------------------------------------------------------------
def _make_proj_kernel(n_in):
    def kernel(*refs):
        xs = refs[:n_in]
        wfs = refs[n_in:2 * n_in]
        wbs = refs[2 * n_in:3 * n_in]
        bf_ref, bb_ref, of_ref, ob_ref = refs[3 * n_in:]
        acc_f = jnp.dot(xs[0][...], wfs[0][...],
                        preferred_element_type=jnp.float32)
        acc_b = jnp.dot(xs[0][...], wbs[0][...],
                        preferred_element_type=jnp.float32)
        for j in range(1, n_in):
            acc_f = acc_f + jnp.dot(xs[j][...], wfs[j][...],
                                    preferred_element_type=jnp.float32)
            acc_b = acc_b + jnp.dot(xs[j][...], wbs[j][...],
                                    preferred_element_type=jnp.float32)
        of_ref[...] = acc_f + bf_ref[...]
        ob_ref[...] = acc_b + bb_ref[...]
    return kernel


def input_projection(xs, wfs, wbs, bf, bb):
    n = xs[0].shape[0]
    g = wfs[0].shape[1]                     # 3H
    tr = _largest_divisor(n, 512)           # row tile (n is a multiple of 8)
    in_specs = (
        [pl.BlockSpec((tr, x.shape[1]), lambda i: (i, 0)) for x in xs]
        + [pl.BlockSpec(w.shape, lambda i: (0, 0)) for w in wfs]
        + [pl.BlockSpec(w.shape, lambda i: (0, 0)) for w in wbs]
        + [pl.BlockSpec(bf.shape, lambda i: (0, 0)),
           pl.BlockSpec(bb.shape, lambda i: (0, 0))])
    out_specs = (pl.BlockSpec((tr, g), lambda i: (i, 0)),
                 pl.BlockSpec((tr, g), lambda i: (i, 0)))
    out_shape = (jax.ShapeDtypeStruct((n, g), jnp.float32),
                 jax.ShapeDtypeStruct((n, g), jnp.float32))
    return pl.pallas_call(
        _make_proj_kernel(len(xs)),
        out_shape=out_shape,
        grid=(n // tr,),
        in_specs=in_specs,
        out_specs=out_specs,
        compiler_params=pltpu.CompilerParams(
            dimension_semantics=("parallel",)),
    )(*xs, *wfs, *wbs, bf, bb)


# ---------------------------------------------------------------------------
# 3) Fused bidirectional GRU recurrence: one grid over time blocks; the fwd
#    direction walks block i, the bwd direction walks block nT-1-i (reversed
#    in-block).  Hidden states persist in VMEM scratch across grid steps.
# ---------------------------------------------------------------------------
def _bigru_kernel(gif_ref, gib_ref, whf_ref, whb_ref, bnf_ref, bnb_ref,
                  outf_ref, outb_ref, hf_ref, hb_ref):
    t_block = gif_ref.shape[0]
    hdim = hf_ref.shape[1]

    @pl.when(pl.program_id(0) == 0)
    def _():
        hf_ref[...] = jnp.zeros_like(hf_ref)
        hb_ref[...] = jnp.zeros_like(hb_ref)

    h_f = hf_ref[...]
    h_b = hb_ref[...]
    w_f = whf_ref[...]
    w_b = whb_ref[...]
    bn_f = bnf_ref[...]
    bn_b = bnb_ref[...]

    def cell(gi, gh, bn, h_prev):
        r = jax.nn.sigmoid(gi[:, :hdim] + gh[:, :hdim])
        z = jax.nn.sigmoid(gi[:, hdim:2 * hdim] + gh[:, hdim:2 * hdim])
        n = jnp.tanh(gi[:, 2 * hdim:] + r * (gh[:, 2 * hdim:] + bn))
        return (1.0 - z) * n + z * h_prev

    # statically unrolled over the (small) time block: full LLO visibility.
    for s in range(t_block):
        gh_f = jnp.dot(h_f, w_f, preferred_element_type=jnp.float32)
        h_f = cell(gif_ref[s], gh_f, bn_f, h_f)
        outf_ref[s] = h_f.astype(outf_ref.dtype)

        gh_b = jnp.dot(h_b, w_b, preferred_element_type=jnp.float32)
        h_b = cell(gib_ref[t_block - 1 - s], gh_b, bn_b, h_b)
        outb_ref[t_block - 1 - s] = h_b.astype(outb_ref.dtype)

    hf_ref[...] = h_f
    hb_ref[...] = h_b


def bigru_layer(gi_f, gi_b, whh_f, whh_b, bhn_f, bhn_b, t_block):
    length, batch, g3 = gi_f.shape
    hdim = g3 // 3
    n_t = length // t_block
    fwd_map = lambda i: (i, 0, 0)
    bwd_map = lambda i: (n_t - 1 - i, 0, 0)
    out_shape = (jax.ShapeDtypeStruct((length, batch, hdim), jnp.float32),
                 jax.ShapeDtypeStruct((length, batch, hdim), jnp.float32))
    return pl.pallas_call(
        _bigru_kernel,
        out_shape=out_shape,
        grid=(n_t,),
        in_specs=[
            pl.BlockSpec((t_block, batch, g3), fwd_map),
            pl.BlockSpec((t_block, batch, g3), bwd_map),
            pl.BlockSpec(whh_f.shape, lambda i: (0, 0)),
            pl.BlockSpec(whh_b.shape, lambda i: (0, 0)),
            pl.BlockSpec(bhn_f.shape, lambda i: (0, 0)),
            pl.BlockSpec(bhn_b.shape, lambda i: (0, 0)),
        ],
        out_specs=(pl.BlockSpec((t_block, batch, hdim), fwd_map),
                   pl.BlockSpec((t_block, batch, hdim), bwd_map)),
        scratch_shapes=[pltpu.VMEM((batch, hdim), jnp.float32),
                        pltpu.VMEM((batch, hdim), jnp.float32)],
        compiler_params=pltpu.CompilerParams(
            dimension_semantics=("arbitrary",)),
    )(gi_f, gi_b, whh_f, whh_b, bhn_f, bhn_b)


# ---------------------------------------------------------------------------
# 4) Fused k-max pooling (over the leading time axis, k running-max passes)
#    + Linear -> BatchNorm1d (eval running stats) -> ReLU -> Linear.
#    The torch permute(0,2,1)+view flatten is folded into the pre-permuted
#    FC weight slabs, so the head is just sum_j pooled_dir[j] @ W1_slab.
# ---------------------------------------------------------------------------
def _make_pool_fc_kernel(k):
    def kernel(of_ref, ob_ref, w1_ref, b1_ref, gam_ref, bet_ref, mu_ref,
               var_ref, w2_ref, b2_ref, out_ref):
        length = of_ref.shape[0]
        batch = of_ref.shape[1]
        hdim = of_ref.shape[2]
        neg_inf = jnp.float32(-jnp.inf)

        def kmax_in_time_order(x_ref):
            vals, idxs = [], []
            for j in range(k):
                prev_idxs = list(idxs)

                def body(t, carry, _prev=prev_idxs):
                    best_v, best_t = carry
                    v = x_ref[t]                              # (B, H)
                    excl = jnp.zeros((batch, hdim), jnp.bool_)
                    for p in _prev:
                        excl = jnp.logical_or(excl, p == t)
                    cand = jnp.where(excl, neg_inf, v)
                    take = cand > best_v                      # earliest index wins ties
                    best_v = jnp.where(take, cand, best_v)
                    best_t = jnp.where(take, t, best_t)
                    return best_v, best_t

                bv0 = jnp.full((batch, hdim), neg_inf, jnp.float32)
                bt0 = jnp.full((batch, hdim), length, jnp.int32)
                bv, bt = lax.fori_loop(0, length, body, (bv0, bt0))
                vals.append(bv)
                idxs.append(bt)
            # restore temporal order (tiny bubble sort of the k (val, idx) pairs)
            for a in range(k):
                for b in range(k - 1 - a):
                    swap = idxs[b] > idxs[b + 1]
                    idxs[b], idxs[b + 1] = (jnp.where(swap, idxs[b + 1], idxs[b]),
                                            jnp.where(swap, idxs[b], idxs[b + 1]))
                    vals[b], vals[b + 1] = (jnp.where(swap, vals[b + 1], vals[b]),
                                            jnp.where(swap, vals[b], vals[b + 1]))
            return vals

        pooled_f = kmax_in_time_order(of_ref)
        pooled_b = kmax_in_time_order(ob_ref)

        h = jnp.dot(pooled_f[0], w1_ref[0], preferred_element_type=jnp.float32)
        for j in range(1, k):
            h = h + jnp.dot(pooled_f[j], w1_ref[j],
                            preferred_element_type=jnp.float32)
        for j in range(k):
            h = h + jnp.dot(pooled_b[j], w1_ref[k + j],
                            preferred_element_type=jnp.float32)
        h = h + b1_ref[...]
        h = (h - mu_ref[...]) * lax.rsqrt(var_ref[...] + 1e-5) * gam_ref[...] \
            + bet_ref[...]
        h = jnp.maximum(h, 0.0)
        out_ref[...] = (jnp.dot(h, w2_ref[...],
                                preferred_element_type=jnp.float32)
                        + b2_ref[...]).astype(out_ref.dtype)
    return kernel


def pool_fc_head(out_f, out_b, fc_params, k):
    length, batch, hdim = out_f.shape
    w1s, b1, gamma, beta, mu, var, w2, b2 = fc_params
    n_cls = w2.shape[1]
    bb = 8 if batch % 8 == 0 else batch       # batch tile
    consts = (w1s, b1, gamma, beta, mu, var, w2, b2)
    in_specs = ([pl.BlockSpec((length, bb, hdim), lambda i: (0, i, 0)),
                 pl.BlockSpec((length, bb, hdim), lambda i: (0, i, 0))]
                + [pl.BlockSpec(c.shape, lambda i, nd=c.ndim: (0,) * nd)
                   for c in consts])
    return pl.pallas_call(
        _make_pool_fc_kernel(k),
        out_shape=jax.ShapeDtypeStruct((batch, n_cls), jnp.float32),
        grid=(batch // bb,),
        in_specs=in_specs,
        out_specs=pl.BlockSpec((bb, n_cls), lambda i: (i, 0)),
        compiler_params=pltpu.CompilerParams(
            dimension_semantics=("parallel",)),
    )(out_f, out_b, *consts)


# ---------------------------------------------------------------------------
# Full model forward.
# ---------------------------------------------------------------------------
def gru_model_forward(text, params, config):
    batch, length = text.shape
    hdim = config['hidden_dim']
    k = config['kmax_pooling']
    assert k <= length

    # pad batch to a sublane multiple once; padded rows sliced off at the end.
    bp = ((batch + 7) // 8) * 8
    if bp != batch:
        text = jnp.pad(text, ((0, bp - batch), (0, 0)))

    # time-major token order (row index = t * bp + b) keeps every reshape free.
    ids = jnp.transpose(text, (1, 0)).reshape(-1)
    emb = embedding_lookup(ids, params['embedding'])            # (L*bp, E)

    xs = [emb]
    out_f = out_b = None
    t_block = _largest_divisor(length, 16)
    for layer in params['gru']:
        gi_f, gi_b = input_projection(xs, layer['proj_wf'], layer['proj_wb'],
                                      layer['proj_bf'], layer['proj_bb'])
        gi_f = gi_f.reshape(length, bp, 3 * hdim)
        gi_b = gi_b.reshape(length, bp, 3 * hdim)
        out_f, out_b = bigru_layer(gi_f, gi_b, layer['whh_f'], layer['whh_b'],
                                   layer['bhn_f'], layer['bhn_b'], t_block)
        # TODO(synk): inter-layer dropout (training-mode stochastic) is not
        # reproduced; eval-mode semantics (no dropout) are implemented.
        xs = [out_f.reshape(length * bp, hdim), out_b.reshape(length * bp, hdim)]

    # TODO(synk): BatchNorm1d batch statistics (train mode) not reproduced;
    # eval-mode running stats are applied inside the fused pool+FC kernel.
    logits = pool_fc_head(out_f, out_b, params['fc'], k)        # (bp, C)
    return logits[:batch]


# ---------------------------------------------------------------------------
# Deterministic parameter initialization (shapes mirror the nn.Module); the
# kernel-facing layouts (transposes, folded biases, FC-weight slab permutation)
# are precomputed here once.
# ---------------------------------------------------------------------------
def init_params(key, config):
    def u(k_, shape, scale=0.1):
        return jax.random.uniform(k_, shape, jnp.float32, -scale, scale)

    vocab, edim, hdim = (config['embed_num'], config['embed_dim'],
                         config['hidden_dim'])
    n_layers = config['lstm_layers']
    kp = config['kmax_pooling']
    lh, n_cls = config['linear_hidden_size'], config['class_num']

    keys = iter(jax.random.split(key, 1 + n_layers * 2 * 4 + 4))
    params = {'embedding': u(next(keys), (vocab, edim), 1.0)}

    layers = []
    din = edim
    for li in range(n_layers):
        per_dir = {}
        for d in ('f', 'b'):
            w_ih = u(next(keys), (3 * hdim, din))
            w_hh = u(next(keys), (3 * hdim, hdim))
            b_ih = u(next(keys), (3 * hdim,))
            b_hh = u(next(keys), (3 * hdim,))
            w_proj = w_ih.T                                   # (din, 3H) [r|z|n]
            # fold b_ih and the r/z parts of b_hh into the hoisted projection;
            # b_hh_n stays separate (it is multiplied by the reset gate).
            b_proj = b_ih + jnp.concatenate(
                [b_hh[:2 * hdim], jnp.zeros((hdim,), jnp.float32)])
            per_dir[d] = dict(w_proj=w_proj,
                              b_proj=b_proj.reshape(1, -1),
                              whh=w_hh.T,
                              bhn=b_hh[2 * hdim:].reshape(1, -1))
        if li == 0:
            wf_list = [per_dir['f']['w_proj']]
            wb_list = [per_dir['b']['w_proj']]
        else:   # deeper layers consume the previous layer's (fwd, bwd) halves
            wf_list = [per_dir['f']['w_proj'][:hdim], per_dir['f']['w_proj'][hdim:]]
            wb_list = [per_dir['b']['w_proj'][:hdim], per_dir['b']['w_proj'][hdim:]]
        layers.append(dict(
            proj_wf=wf_list, proj_wb=wb_list,
            proj_bf=per_dir['f']['b_proj'], proj_bb=per_dir['b']['b_proj'],
            whh_f=per_dir['f']['whh'], whh_b=per_dir['b']['whh'],
            bhn_f=per_dir['f']['bhn'], bhn_b=per_dir['b']['bhn']))
        din = 2 * hdim
    params['gru'] = layers

    feat = kp * 2 * hdim
    w1 = u(next(keys), (lh, feat))
    b1 = u(next(keys), (lh,))
    w2 = u(next(keys), (n_cls, lh))
    b2 = u(next(keys), (n_cls,))
    w1_t = w1.T                                               # (feat, lh); row = c*kp + j
    slabs = []
    for c0 in (0, hdim):                                      # fwd channels, then bwd
        for j in range(kp):
            rows = (jnp.arange(hdim) + c0) * kp + j
            slabs.append(w1_t[rows])                          # (H, lh)
    w1s = jnp.stack(slabs)                                    # (2*kp, H, lh)
    params['fc'] = (w1s, b1.reshape(1, -1),
                    jnp.ones((1, lh), jnp.float32), jnp.zeros((1, lh), jnp.float32),
                    jnp.zeros((1, lh), jnp.float32), jnp.ones((1, lh), jnp.float32),
                    w2.T, b2.reshape(1, -1))
    return params


if __name__ == "__main__":
    config = dict(
        kmax_pooling=2,
        embed_num=50,
        embed_dim=32,
        hidden_dim=32,
        lstm_layers=2,
        dropout=0.0,
        linear_hidden_size=64,
        class_num=4,
    )
    batch, length = 2, 8

    key = jax.random.PRNGKey(0)
    pkey, tkey = jax.random.split(key)
    params = init_params(pkey, config)
    text = jax.random.randint(tkey, (batch, length), 0, config['embed_num'],
                              dtype=jnp.int32)

    logits = gru_model_forward(text, params, config)
    jax.block_until_ready(logits)
    assert logits.shape == (batch, config['class_num'])
    assert bool(jnp.all(jnp.isfinite(logits)))
    print("KERNEL_OK")
</pallas_src>

<mosaic_0001>
module attributes {stable_mosaic.version = 11 : i64} {
  func.func @_embed_kernel(%arg0: i32, %arg1: memref<64xi32, #tpu.memory_space<smem>>, %arg2: memref<1x1x32xf32, #tpu.memory_space<vmem>>, %arg3: memref<1x1x32xf32, #tpu.memory_space<vmem>>) attributes {dimension_semantics = [#tpu.dimension_semantics<parallel>], iteration_bounds = array<i64: 64>, scalar_prefetch = 1 : i64, scratch_operands = 0 : i64, tpu.core_type = #tpu.core_type<tc>, window_params = [{transform_indices = @transform_0, window_bounds = array<i64: 1, 1, 32>}, {transform_indices = @transform_1, window_bounds = array<i64: 1, 1, 32>}]} {
    %c0 = arith.constant 0 : index
    %c0_0 = arith.constant 0 : index
    %c0_1 = arith.constant 0 : index
    %0 = vector.load %arg2[%c0, %c0_0, %c0_1] : memref<1x1x32xf32, #tpu.memory_space<vmem>>, vector<1x1x32xf32>
    %c0_2 = arith.constant 0 : index
    %c0_3 = arith.constant 0 : index
    %c0_4 = arith.constant 0 : index
    %1 = vector.load %arg3[%c0_2, %c0_3, %c0_4] : memref<1x1x32xf32, #tpu.memory_space<vmem>>, vector<1x1x32xf32>
    tpu.vector_store %arg3[%c0_2, %c0_3, %c0_4], %0 {strides = array<i32>} : memref<1x1x32xf32, #tpu.memory_space<vmem>>, vector<1x1x32xf32>,
    return
  }
  func.func @transform_0(%arg0: i32, %arg1: memref<64xi32, #tpu.memory_space<smem>>) -> (i32, i32, i32) {
    %0 = arith.index_cast %arg0 : i32 to index
    %1 = memref.load %arg1[%0] : memref<64xi32, #tpu.memory_space<smem>>
    %c0_i32 = arith.constant 0 : i32
    %c0_i32_0 = arith.constant 0 : i32
    %c0_i32_1 = arith.constant 0 : i32
    return %1, %c0_i32, %c0_i32_0 : i32, i32, i32
  }
  func.func @transform_1(%arg0: i32, %arg1: memref<64xi32, #tpu.memory_space<smem>>) -> (i32, i32, i32) {
    %c0_i32 = arith.constant 0 : i32
    %c0_i32_0 = arith.constant 0 : i32
    %c0_i32_1 = arith.constant 0 : i32
    return %arg0, %c0_i32, %c0_i32_0 : i32, i32, i32
  }
}

</mosaic_0001>

<llo_original>
// kernel: tpu_custom_call.1
$region0: #{tpu_custom_call.1}
  #allocation0 [shape = 'u32[]', space=smem, size = 0x4, offset = 0x4, fixed_abs, tag = 'smem constant byte address 0x4 - core index']
  #allocation1 [shape = 'u32[144,128]{1,0:T(1,128)}', space=vmem, size = 0x12000, scoped, tag = 'internal scratch']
  #allocation2 [shape = 's32[1]{0}', space=sflag, size = 0x4, scoped, tag = 'scoped memory for tpu_custom_call.1']
  #allocation3 [shape = 'u8[512]{0}', space=smem, size = 0x200, scoped, tag = 'prefetched SMEM operand 0']
  %s0 = inlined_call_operand.vmem [shape: s32[64], index: 0, kind: input, shape index: {}]
  %s1 = inlined_call_operand.vmem [shape: f32[50,1,32], index: 1, kind: input, shape index: {}]
  %s2 = inlined_call_operand.vmem [shape: f32[64,1,32], index: 2, kind: output, shape index: {}]
  %s3 = sld [smem:[#allocation0]]
  $region37: #{tpu_custom_call.1} parent=0
    _
  %s5 = ssub.s32 1, %s3
  %s6 = scalar_select 0, %s5, %s3
  %s7 = sshll.u32 %s0, 4
  %s8 = int_to_ptr.vmem [resolvable:$true] %s7
  %10 = dma.vmem_to_smem %s8, 16, [#allocation3], [#allocation2]
  %11 = dma.done [#allocation2], 16
  %12 = sfence
  loop: start=0, step=1, limit=66
  $region2: #{tpu_custom_call.1} parent=0 // loop_pre_header
    _
  $region3: #{tpu_custom_call.1} parent=0 // loop_header
    %s14 = sphi 0, %s18
    %p15 = scmp.ge.s32.totalorder %s14, 66
    %s26 = sphi 0, %s28
    %s29 = sphi 0, %s26
    %s30 = sphi 0, %s29
    %s46 = sphi 0, %s30
    %s52 = sphi 0, %s54
    %s55 = sphi 0, %s52
    %s56 = sphi 0, %s55
    %s72 = sphi 0, %s56
  $region4: #{tpu_custom_call.1} parent=0 // loop_header_branch
    %17 = sbr.rel (%p15) target = $region8
  $region5: #{tpu_custom_call.1} parent=0 // loop_body
    %s19 = ssub.s32 %s14, 1
    %s20 = ssub.s32 %s14, 2
    %s21 = sadd.s32 %s14, 1
    %s22 = sld [smem:[#allocation3 + %s14]]
    %s23 = sld [smem:[#allocation3 + %s21]]
    %s24 = ssub.s32 %s22, %s23
    %p25 = scmp.eq.s32.totalorder %s24, 0
    %s27 = sadd.s32 %s26, 1
    %s28 = scalar_select %p25, %s26, %s27
    %p31 = pneg %p25
    %p32 = scmp.eq.s32.totalorder %s14, 63
    %p33 = por %p31, %p32
    %p34 = scmp.ne.s32.totalorder %s26, %s29
    %p35 = scmp.eq.s32.totalorder %s14, 0
    %p36 = por %p34, %p35
    %p37 = scmp.ne.s32.totalorder %s26, %s29
    %p38 = scmp.eq.s32.totalorder %s19, 63
    %p39 = por %p37, %p38
    %p40 = scmp.ne.s32.totalorder %s29, %s30
    %p41 = scmp.eq.s32.totalorder %s19, 0
    %p42 = por %p40, %p41
    %p43 = scmp.ne.s32.totalorder %s29, %s30
    %p44 = scmp.eq.s32.totalorder %s20, 63
    %p45 = por %p43, %p44
    %p47 = scmp.ne.s32.totalorder %s30, %s46
    %p48 = scmp.eq.s32.totalorder %s20, 0
    %p49 = por %p47, %p48
    %s50 = ssub.s32 %s14, %s21
    %p51 = scmp.eq.s32.totalorder %s50, 0
    %s53 = sadd.s32 %s52, 1
    %s54 = scalar_select %p51, %s52, %s53
    %p57 = pneg %p51
    %p58 = scmp.eq.s32.totalorder %s14, 63
    %p59 = por %p57, %p58
    %p60 = scmp.ne.s32.totalorder %s52, %s55
    %p61 = scmp.eq.s32.totalorder %s14, 0
    %p62 = por %p60, %p61
    %p63 = scmp.ne.s32.totalorder %s52, %s55
    %p64 = scmp.eq.s32.totalorder %s19, 63
    %p65 = por %p63, %p64
    %p66 = scmp.ne.s32.totalorder %s55, %s56
    %p67 = scmp.eq.s32.totalorder %s19, 0
    %p68 = por %p66, %p67
    %p69 = scmp.ne.s32.totalorder %s55, %s56
    %p70 = scmp.eq.s32.totalorder %s20, 63
    %p71 = por %p69, %p70
    %p73 = scmp.ne.s32.totalorder %s56, %s72
    %p74 = scmp.eq.s32.totalorder %s20, 0
    %p75 = por %p73, %p74
    %p76 = scmp.le.s32.totalorder 1, %s14
    %p77 = scmp.lt.s32.totalorder %s14, 65
    %p78 = pnand %p76, %p77
    %p79 = pneg %p78
    // Predicated region
    $region9: #{tpu_custom_call.1} parent=5 // pred_check
      _
    $region10: #{tpu_custom_call.1} parent=5 // pred_check_branch
      %81 = sbr.rel (%p78) target = $region12
    $region11: #{tpu_custom_call.1} parent=5 // pred_region
      %s82 = ssub.s32 %s14, 1
    $region12: #{tpu_custom_call.1} parent=5 // pred_fallthru
      _
    %p83 = scmp.lt.s32.totalorder %s14, 64
    // Predicated region
    $region13: #{tpu_custom_call.1} parent=5 // pred_check
      %p84 = pneg %p83
    $region14: #{tpu_custom_call.1} parent=5 // pred_check_branch
      %86 = sbr.rel (%p84) target = $region16
    $region15: #{tpu_custom_call.1} parent=5 // pred_region
      // Predicated region
      $region17: #{tpu_custom_call.1} parent=15 // pred_check
        %p87 = pneg %p36
      $region18: #{tpu_custom_call.1} parent=15 // pred_check_branch
        %89 = sbr.rel (%p87) target = $region20
      $region19: #{tpu_custom_call.1} parent=15 // pred_region
        %s90 = sld [smem:[#allocation3 + %s14]]
        %p91 = scmp.lt.s32.totalorder %s90, 49
        %s92 = scalar_select %p91, %s90, 49
        %s93 = scalar_lea.vmem %s1, %s92
        %s94 = sld [smem:[#allocation3 + %s14]]
      $region20: #{tpu_custom_call.1} parent=15 // pred_fallthru
        _
    $region16: #{tpu_custom_call.1} parent=5 // pred_fallthru
      _
    %p95 = scmp.le.s32.totalorder 1, %s14
    %p96 = scmp.lt.s32.totalorder %s14, 65
    %p97 = pnand %p95, %p96
    %p98 = pneg %p97
    // Predicated region
    $region21: #{tpu_custom_call.1} parent=5 // pred_check
      _
    $region22: #{tpu_custom_call.1} parent=5 // pred_check_branch
      %100 = sbr.rel (%p97) target = $region24
    $region23: #{tpu_custom_call.1} parent=5 // pred_region
      %s101 = ssub.s32 %s14, 1
      %s102 = sld [smem:[#allocation3 + %s19]]
      %p103 = scmp.lt.s32.totalorder %s102, 49
      %s104 = scalar_select %p103, %s102, 49
      %s105 = scalar_lea.vmem %s1, %s104
      %p106 = pneg %p42
      %p107 = pneg %p39
      %p108 = pneg %p68
      %p109 = pneg %p65
      %p110 = scmp.lt.s32.totalorder %s19, 63
      %s111 = scalar_select %p110, %s19, 63
      %s112 = scalar_lea.vmem %s2, %s111
      %s113 = sld [smem:[#allocation3 + %s19]]
      %p114 = scmp.lt.s32.totalorder %s113, 49
      %s115 = scalar_select %p114, %s113, 49
      %s116 = scalar_lea.vmem %s1, %s115
      %s117 = sld [smem:[#allocation3 + %s19]]
      %p118 = scmp.lt.s32.totalorder %s19, 63
      %s119 = scalar_select %p118, %s19, 63
      %s120 = scalar_lea.vmem %s2, %s119
      %v121 = vld [vmem:[%s116] sm:$0x1]
      %vm122 = vcmask 253952
      %123 = vst.msk [vmem:[%s120] sm:$0x1] %vm122, %v121
      %p124 = scmp.lt.s32.totalorder %s19, 63
      %s125 = scalar_select %p124, %s19, 63
      %s126 = scalar_lea.vmem %s2, %s125
      // Predicated region
      $region25: #{tpu_custom_call.1} parent=23 // pred_check
        %p127 = pneg %p65
      $region26: #{tpu_custom_call.1} parent=23 // pred_check_branch
        %129 = sbr.rel (%p127) target = $region28
      $region27: #{tpu_custom_call.1} parent=23 // pred_region
        _
      $region28: #{tpu_custom_call.1} parent=23 // pred_fallthru
        _
    $region24: #{tpu_custom_call.1} parent=5 // pred_fallthru
      _
    %p130 = scmp.le.s32.totalorder 2, %s14
    // Predicated region
    $region29: #{tpu_custom_call.1} parent=5 // pred_check
      %p131 = pneg %p130
    $region30: #{tpu_custom_call.1} parent=5 // pred_check_branch
      %133 = sbr.rel (%p131) target = $region32
    $region31: #{tpu_custom_call.1} parent=5 // pred_region
      %s134 = ssub.s32 %s14, 2
      // Predicated region
      $region33: #{tpu_custom_call.1} parent=31 // pred_check
        %p135 = pneg %p71
      $region34: #{tpu_custom_call.1} parent=31 // pred_check_branch
        %137 = sbr.rel (%p135) target = $region36
      $region35: #{tpu_custom_call.1} parent=31 // pred_region
        %p138 = scmp.lt.s32.totalorder %s20, 63
        %s139 = scalar_select %p138, %s20, 63
        %s140 = scalar_lea.vmem %s2, %s139
      $region36: #{tpu_custom_call.1} parent=31 // pred_fallthru
        _
    $region32: #{tpu_custom_call.1} parent=5 // pred_fallthru
      _
  $region6: #{tpu_custom_call.1} parent=0 // loop_footer
    %s18 = sadd.s32 1, %s14
  $region7: #{tpu_custom_call.1} parent=0 // loop_footer_branch
    %13 = sbr.rel target = $region3
  $region8: #{tpu_custom_call.1} parent=0 // loop_exit
    _

</llo_original>
